<compile_context>
chip_gen: v6e
topology: v6e:2x2x1
jax: 0.10.0
libtpu: 0.0.40
codegen_flags: <defaults>
</compile_context>

<pallas_src>
import functools
import math

import jax
import jax.numpy as jnp
from jax.experimental import pallas as pl
from jax.experimental.pallas import tpu as pltpu

_LANE = 128      # lane width (last dim granularity)
_SUBLANE = 8     # f32 sublane granularity (second-to-last dim)


def _round_up(x: int, m: int) -> int:
    return ((x + m - 1) // m) * m


def _mlp_fused_kernel(*refs, n_layers, inter_dims, compute_dtype):
    """Fused MLP forward for one batch tile.

    refs = (x_ref,
            w0_ref, b0_ref, ..., w{L-1}_ref, b{L-1}_ref,
            o_ref,
            [buf_a, buf_b])            # only when there is >= 1 hidden layer

    x_ref : [tile_b, Din_pad]          (f32, zero-padded)
    w_i   : [Din_pad_i, Dout_pad_i]    (f32, zero-padded)
    b_i   : [1, Dout_pad_i]            (f32, zero-padded)
    o_ref : [tile_b, Dout_pad_last]
    buf_* : [tile_b, max(inter_dims)]  f32 VMEM scratch (ping-pong activations)
    """
    x_ref = refs[0]
    wb_refs = refs[1:1 + 2 * n_layers]
    o_ref = refs[1 + 2 * n_layers]
    buf_refs = refs[2 + 2 * n_layers:]

    act = x_ref[...]
    for i in range(n_layers):
        w_ref = wb_refs[2 * i]
        b_ref = wb_refs[2 * i + 1]
        # MXU matmul in compute_dtype (bf16 on v6e/v7x), f32 accumulation.
        acc = jnp.dot(act.astype(compute_dtype),
                      w_ref[...].astype(compute_dtype),
                      preferred_element_type=jnp.float32)
        # Epilogue: bias (broadcast [1, Dout] over batch) once per layer.
        acc = acc + b_ref[...].astype(jnp.float32)
        if i < n_layers - 1:
            acc = jnp.maximum(acc, 0.0)          # ReLU between layers only
            d = inter_dims[i]                    # static, multiple of 128
            buf = buf_refs[i % 2]                # ping-pong VMEM scratch
            buf[:, :d] = acc
            act = buf[:, :d]
        else:
            o_ref[...] = acc.astype(o_ref.dtype)


def mlp_forward_pallas(x, params, layer_sizes, *, compute_dtype=jnp.bfloat16,
                       interpret=False):
    """Run the whole MLP as a single fused Pallas call.

    x           : [batch, input_size] activations
    params      : list of (w_padded [p_in, p_out], b_padded [1, p_out]), padded
                  to multiples of 128 with zeros.
    layer_sizes : original (unpadded) sizes [d0, d1, ..., dL]
    """
    batch, d_in = x.shape
    n_layers = len(params)
    p_sizes = [_round_up(s, _LANE) for s in layer_sizes]
    itemsize = jnp.dtype(x.dtype).itemsize

    # Batch tiling: sublane-aligned tile, padded batch, grid over batch tiles.
    tile_b = min(128, _round_up(batch, _SUBLANE))
    b_pad = _round_up(batch, tile_b)
    grid = (b_pad // tile_b,)

    # Zero-pad the input to [b_pad, p_sizes[0]] (lane-dense, padded lanes = 0).
    x_pad = jnp.pad(x, ((0, b_pad - batch), (0, p_sizes[0] - d_in)))

    # Inputs + BlockSpecs: x is tiled over batch; weights/biases are whole-array
    # blocks (constant index_map) and stay resident in VMEM across the grid.
    flat_inputs = [x_pad]
    in_specs = [pl.BlockSpec((tile_b, p_sizes[0]), lambda i: (i, 0))]
    for (w, b) in params:
        flat_inputs += [w, b]
        in_specs.append(pl.BlockSpec(w.shape, lambda i: (0, 0)))
        in_specs.append(pl.BlockSpec(b.shape, lambda i: (0, 0)))

    p_out_last = p_sizes[-1]
    out_specs = pl.BlockSpec((tile_b, p_out_last), lambda i: (i, 0))
    out_shape = jax.ShapeDtypeStruct((b_pad, p_out_last), x.dtype)

    # Ping-pong f32 scratch for intermediate activations (never hit HBM).
    inter_dims = tuple(p_sizes[1:-1])
    scratch_shapes = []
    scratch_bytes = 0
    if n_layers > 1:
        max_inter = max(inter_dims)
        scratch_shapes = [pltpu.VMEM((tile_b, max_inter), jnp.float32)] * 2
        scratch_bytes = 2 * tile_b * max_inter * 4

    # Cost estimate so XLA schedules around the custom call sensibly.
    flops = 2 * b_pad * sum(p_sizes[i] * p_sizes[i + 1] for i in range(n_layers))
    bytes_params = sum(w.size * w.dtype.itemsize + b.size * b.dtype.itemsize
                       for (w, b) in params)
    bytes_accessed = (x_pad.size * itemsize + bytes_params
                      + b_pad * p_out_last * itemsize)
    cost = pl.CostEstimate(flops=flops, transcendentals=0,
                           bytes_accessed=bytes_accessed)

    # VMEM budget with headroom: double-buffered x/out tiles + resident params
    # + scratch.  Capped at 32 MiB (safe on v5e/v6e/v7x scoped limits).
    vmem_needed = (2 * tile_b * p_sizes[0] * itemsize
                   + 2 * bytes_params
                   + 2 * tile_b * p_out_last * itemsize
                   + scratch_bytes)
    vmem_limit = int(min(max(2 * vmem_needed, 8 * 1024 * 1024), 32 * 1024 * 1024))

    kernel = functools.partial(_mlp_fused_kernel, n_layers=n_layers,
                               inter_dims=inter_dims,
                               compute_dtype=compute_dtype)

    out_padded = pl.pallas_call(
        kernel,
        out_shape=out_shape,
        grid_spec=pltpu.PrefetchScalarGridSpec(
            num_scalar_prefetch=0,
            grid=grid,
            in_specs=in_specs,
            out_specs=out_specs,
            scratch_shapes=scratch_shapes,
        ),
        compiler_params=pltpu.CompilerParams(
            dimension_semantics=("parallel",),   # v7x: split batch tiles across 2 TCs
            vmem_limit_bytes=vmem_limit,
        ),
        cost_estimate=cost,
        interpret=interpret,
    )(*flat_inputs)

    # Slice away batch / lane padding.
    return out_padded[:batch, :layer_sizes[-1]]


class MLP:
    """JAX/Pallas port of the PyTorch MLP (Linear layers + ReLU between)."""

    def __init__(self, input_size, output_size, hidden_sizes=(512,), key=None,
                 dtype=jnp.float32, compute_dtype=jnp.bfloat16):
        self.input_size = input_size
        self.output_size = output_size
        self.hidden_sizes = list(hidden_sizes)
        self.layer_sizes = [input_size] + self.hidden_sizes + [output_size]
        self.padded_sizes = [_round_up(s, _LANE) for s in self.layer_sizes]
        self.compute_dtype = compute_dtype

        if key is None:
            key = jax.random.PRNGKey(0)

        self.params = []      # padded (w [p_in, p_out], b [1, p_out]) for the kernel
        self.params_raw = []  # unpadded, for the pure-JAX reference
        for i in range(len(self.layer_sizes) - 1):
            in_dim, out_dim = self.layer_sizes[i], self.layer_sizes[i + 1]
            p_in, p_out = self.padded_sizes[i], self.padded_sizes[i + 1]
            key, wk, bk = jax.random.split(key, 3)
            # Mimics torch.nn.Linear default init: U(-1/sqrt(in), 1/sqrt(in)).
            bound = 1.0 / math.sqrt(in_dim)
            w = jax.random.uniform(wk, (in_dim, out_dim), dtype=dtype,
                                   minval=-bound, maxval=bound)
            b = jax.random.uniform(bk, (out_dim,), dtype=dtype,
                                   minval=-bound, maxval=bound)
            # Zero-pad to lane-dense multiples of 128; padded rows/cols are zero
            # so padded lanes never contaminate downstream layers.
            w_p = jnp.zeros((p_in, p_out), dtype).at[:in_dim, :out_dim].set(w)
            b_p = jnp.zeros((1, p_out), dtype).at[0, :out_dim].set(b)
            self.params.append((w_p, b_p))
            self.params_raw.append((w, b))

    def __call__(self, x):
        return mlp_forward_pallas(x, self.params, self.layer_sizes,
                                  compute_dtype=self.compute_dtype)


def _reference_forward(x, params_raw, compute_dtype=jnp.bfloat16):
    """Pure-JAX reference with the same bf16-in / f32-accumulate numerics."""
    n = len(params_raw)
    for i, (w, b) in enumerate(params_raw):
        x = jnp.dot(x.astype(compute_dtype), w.astype(compute_dtype),
                    preferred_element_type=jnp.float32) + b.astype(jnp.float32)
        if i < n - 1:
            x = jnp.maximum(x, 0.0)
    return x.astype(jnp.float32)


def _reference_forward_f32(x, params_raw):
    """Full-precision reference (matches the PyTorch spec semantics)."""
    n = len(params_raw)
    for i, (w, b) in enumerate(params_raw):
        x = x @ w + b
        if i < n - 1:
            x = jnp.maximum(x, 0.0)
    return x


if __name__ == "__main__":
    key = jax.random.PRNGKey(0)
    key_x, key_p = jax.random.split(key)

    batch = 8
    input_size = 32
    hidden_sizes = [64, 48]
    output_size = 16

    x = jax.random.normal(key_x, (batch, input_size), dtype=jnp.float32)

    mlp = MLP(input_size, output_size, hidden_sizes, key=key_p)

    out = mlp(x)
    out = jax.block_until_ready(out)
    assert out.shape == (batch, output_size)

    # Exact-numerics reference (same bf16-in / f32-accumulate path).
    ref = _reference_forward(x, mlp.params_raw, compute_dtype=mlp.compute_dtype)
    assert jnp.allclose(out, ref, atol=2e-3, rtol=2e-3), "mismatch vs bf16 reference"

    # Full-f32 reference (spec semantics), loose tolerance for bf16 matmul inputs.
    ref_f32 = _reference_forward_f32(x, mlp.params_raw)
    assert jnp.allclose(out, ref_f32, atol=5e-2, rtol=5e-2), "mismatch vs f32 reference"

    print("KERNEL_OK")
</pallas_src>

<mosaic_0001>
module attributes {stable_mosaic.version = 11 : i64} {
  func.func @_mlp_fused_kernel(%arg0: i32, %arg1: memref<8x128xf32, #tpu.memory_space<vmem>>, %arg2: memref<128x128xf32, #tpu.memory_space<vmem>>, %arg3: memref<1x128xf32, #tpu.memory_space<vmem>>, %arg4: memref<128x128xf32, #tpu.memory_space<vmem>>, %arg5: memref<1x128xf32, #tpu.memory_space<vmem>>, %arg6: memref<128x128xf32, #tpu.memory_space<vmem>>, %arg7: memref<1x128xf32, #tpu.memory_space<vmem>>, %arg8: memref<8x128xf32, #tpu.memory_space<vmem>>, %arg9: memref<8x128xf32, #tpu.memory_space<vmem>>, %arg10: memref<8x128xf32, #tpu.memory_space<vmem>>) attributes {dimension_semantics = [#tpu.dimension_semantics<parallel>], iteration_bounds = array<i64: 1>, scalar_prefetch = 0 : i64, scratch_operands = 2 : i64, tpu.core_type = #tpu.core_type<tc>, window_params = [{transform_indices = @transform_0, window_bounds = array<i64: 8, 128>}, {pipeline_mode = #tpu.pipeline_mode<synchronous>, transform_indices = @transform_1, window_bounds = array<i64: 128, 128>}, {pipeline_mode = #tpu.pipeline_mode<synchronous>, transform_indices = @transform_2, window_bounds = array<i64: 1, 128>}, {pipeline_mode = #tpu.pipeline_mode<synchronous>, transform_indices = @transform_3, window_bounds = array<i64: 128, 128>}, {pipeline_mode = #tpu.pipeline_mode<synchronous>, transform_indices = @transform_4, window_bounds = array<i64: 1, 128>}, {pipeline_mode = #tpu.pipeline_mode<synchronous>, transform_indices = @transform_5, window_bounds = array<i64: 128, 128>}, {pipeline_mode = #tpu.pipeline_mode<synchronous>, transform_indices = @transform_6, window_bounds = array<i64: 1, 128>}, {transform_indices = @transform_7, window_bounds = array<i64: 8, 128>}]} {
    %c0 = arith.constant 0 : index
    %c0_0 = arith.constant 0 : index
    %0 = vector.load %arg1[%c0, %c0_0] : memref<8x128xf32, #tpu.memory_space<vmem>>, vector<8x128xf32>
    %1 = arith.truncf %0 : vector<8x128xf32> to vector<8x128xbf16>
    %c0_1 = arith.constant 0 : index
    %c0_2 = arith.constant 0 : index
    %2 = vector.load %arg2[%c0_1, %c0_2] : memref<128x128xf32, #tpu.memory_space<vmem>>, vector<128x128xf32>
    %3 = arith.truncf %2 : vector<128x128xf32> to vector<128x128xbf16>
    %cst = arith.constant dense<0.000000e+00> : vector<8x128xf32>
    %4 = tpu.matmul %1, %3, %cst {dimension_numbers = #tpu.dot_dimension_numbers<[1], [0], [0], [1], [0, 0, 1, 1], [], []>} : vector<8x128xbf16>, vector<128x128xbf16>, vector<8x128xf32> -> vector<8x128xf32>
    %c0_3 = arith.constant 0 : index
    %c0_4 = arith.constant 0 : index
    %5 = vector.load %arg3[%c0_3, %c0_4] : memref<1x128xf32, #tpu.memory_space<vmem>>, vector<1x128xf32>
    %6 = vector.broadcast %5 : vector<1x128xf32> to vector<8x128xf32>
    %7 = arith.addf %4, %6 : vector<8x128xf32>
    %cst_5 = arith.constant 0.000000e+00 : f32
    %8 = vector.broadcast %cst_5 : f32 to vector<8x128xf32>
    %9 = arith.maximumf %7, %8 : vector<8x128xf32>
    %c0_6 = arith.constant 0 : index
    %c0_7 = arith.constant 0 : index
    %10 = vector.load %arg9[%c0_6, %c0_7] : memref<8x128xf32, #tpu.memory_space<vmem>>, vector<8x128xf32>
    tpu.vector_store %arg9[%c0_6, %c0_7], %9 {strides = array<i32>} : memref<8x128xf32, #tpu.memory_space<vmem>>, vector<8x128xf32>,
    %c0_8 = arith.constant 0 : index
    %c0_9 = arith.constant 0 : index
    %11 = vector.load %arg9[%c0_8, %c0_9] : memref<8x128xf32, #tpu.memory_space<vmem>>, vector<8x128xf32>
    %12 = arith.truncf %11 : vector<8x128xf32> to vector<8x128xbf16>
    %c0_10 = arith.constant 0 : index
    %c0_11 = arith.constant 0 : index
    %13 = vector.load %arg4[%c0_10, %c0_11] : memref<128x128xf32, #tpu.memory_space<vmem>>, vector<128x128xf32>
    %14 = arith.truncf %13 : vector<128x128xf32> to vector<128x128xbf16>
    %cst_12 = arith.constant dense<0.000000e+00> : vector<8x128xf32>
    %15 = tpu.matmul %12, %14, %cst_12 {dimension_numbers = #tpu.dot_dimension_numbers<[1], [0], [0], [1], [0, 0, 1, 1], [], []>} : vector<8x128xbf16>, vector<128x128xbf16>, vector<8x128xf32> -> vector<8x128xf32>
    %c0_13 = arith.constant 0 : index
    %c0_14 = arith.constant 0 : index
    %16 = vector.load %arg5[%c0_13, %c0_14] : memref<1x128xf32, #tpu.memory_space<vmem>>, vector<1x128xf32>
    %17 = vector.broadcast %16 : vector<1x128xf32> to vector<8x128xf32>
    %18 = arith.addf %15, %17 : vector<8x128xf32>
    %cst_15 = arith.constant 0.000000e+00 : f32
    %19 = vector.broadcast %cst_15 : f32 to vector<8x128xf32>
    %20 = arith.maximumf %18, %19 : vector<8x128xf32>
    %c0_16 = arith.constant 0 : index
    %c0_17 = arith.constant 0 : index
    %21 = vector.load %arg10[%c0_16, %c0_17] : memref<8x128xf32, #tpu.memory_space<vmem>>, vector<8x128xf32>
    tpu.vector_store %arg10[%c0_16, %c0_17], %20 {strides = array<i32>} : memref<8x128xf32, #tpu.memory_space<vmem>>, vector<8x128xf32>,
    %c0_18 = arith.constant 0 : index
    %c0_19 = arith.constant 0 : index
    %22 = vector.load %arg10[%c0_18, %c0_19] : memref<8x128xf32, #tpu.memory_space<vmem>>, vector<8x128xf32>
    %23 = arith.truncf %22 : vector<8x128xf32> to vector<8x128xbf16>
    %c0_20 = arith.constant 0 : index
    %c0_21 = arith.constant 0 : index
    %24 = vector.load %arg6[%c0_20, %c0_21] : memref<128x128xf32, #tpu.memory_space<vmem>>, vector<128x128xf32>
    %25 = arith.truncf %24 : vector<128x128xf32> to vector<128x128xbf16>
    %cst_22 = arith.constant dense<0.000000e+00> : vector<8x128xf32>
    %26 = tpu.matmul %23, %25, %cst_22 {dimension_numbers = #tpu.dot_dimension_numbers<[1], [0], [0], [1], [0, 0, 1, 1], [], []>} : vector<8x128xbf16>, vector<128x128xbf16>, vector<8x128xf32> -> vector<8x128xf32>
    %c0_23 = arith.constant 0 : index
    %c0_24 = arith.constant 0 : index
    %27 = vector.load %arg7[%c0_23, %c0_24] : memref<1x128xf32, #tpu.memory_space<vmem>>, vector<1x128xf32>
    %28 = vector.broadcast %27 : vector<1x128xf32> to vector<8x128xf32>
    %29 = arith.addf %26, %28 : vector<8x128xf32>
    %c0_25 = arith.constant 0 : index
    %c0_26 = arith.constant 0 : index
    %30 = vector.load %arg8[%c0_25, %c0_26] : memref<8x128xf32, #tpu.memory_space<vmem>>, vector<8x128xf32>
    tpu.vector_store %arg8[%c0_25, %c0_26], %29 {strides = array<i32>} : memref<8x128xf32, #tpu.memory_space<vmem>>, vector<8x128xf32>,
    return
  }
  func.func @transform_0(%arg0: i32) -> (i32, i32) {
    %c0_i32 = arith.constant 0 : i32
    %c0_i32_0 = arith.constant 0 : i32
    return %arg0, %c0_i32 : i32, i32
  }
  func.func @transform_1(%arg0: i32) -> (i32, i32) {
    %c0_i32 = arith.constant 0 : i32
    %c0_i32_0 = arith.constant 0 : i32
    %c0_i32_1 = arith.constant 0 : i32
    return %c0_i32, %c0_i32_0 : i32, i32
  }
  func.func @transform_2(%arg0: i32) -> (i32, i32) {
    %c0_i32 = arith.constant 0 : i32
    %c0_i32_0 = arith.constant 0 : i32
    %c0_i32_1 = arith.constant 0 : i32
    return %c0_i32, %c0_i32_0 : i32, i32
  }
  func.func @transform_3(%arg0: i32) -> (i32, i32) {
    %c0_i32 = arith.constant 0 : i32
    %c0_i32_0 = arith.constant 0 : i32
    %c0_i32_1 = arith.constant 0 : i32
    return %c0_i32, %c0_i32_0 : i32, i32
  }
  func.func @transform_4(%arg0: i32) -> (i32, i32) {
    %c0_i32 = arith.constant 0 : i32
    %c0_i32_0 = arith.constant 0 : i32
    %c0_i32_1 = arith.constant 0 : i32
    return %c0_i32, %c0_i32_0 : i32, i32
  }
  func.func @transform_5(%arg0: i32) -> (i32, i32) {
    %c0_i32 = arith.constant 0 : i32
    %c0_i32_0 = arith.constant 0 : i32
    %c0_i32_1 = arith.constant 0 : i32
    return %c0_i32, %c0_i32_0 : i32, i32
  }
  func.func @transform_6(%arg0: i32) -> (i32, i32) {
    %c0_i32 = arith.constant 0 : i32
    %c0_i32_0 = arith.constant 0 : i32
    %c0_i32_1 = arith.constant 0 : i32
    return %c0_i32, %c0_i32_0 : i32, i32
  }
  func.func @transform_7(%arg0: i32) -> (i32, i32) {
    %c0_i32 = arith.constant 0 : i32
    %c0_i32_0 = arith.constant 0 : i32
    return %arg0, %c0_i32 : i32, i32
  }
}

</mosaic_0001>

<llo_original>
// kernel: tpu_custom_call.1
$region0: #{tpu_custom_call.1}
  #allocation0 [shape = 'u32[]', space=smem, size = 0x4, offset = 0x4, fixed_abs, tag = 'smem constant byte address 0x4 - core index']
  #allocation1 [shape = 'u32[144,128]{1,0:T(1,128)}', space=vmem, size = 0x12000, scoped, tag = 'internal scratch']
  #allocation2 [shape = 'f32[8,128]{1,0:T(8,128)}', space=vmem, size = 0x1000, scoped, tag = 'scratch operand']
  #allocation3 [shape = 'f32[8,128]{1,0:T(8,128)}', space=vmem, size = 0x1000, scoped, tag = 'scratch operand']
  %s0 = inlined_call_operand.hbm [shape: f32[8,128], index: 0, kind: input, shape index: {}]
  %s1 = inlined_call_operand.hbm [shape: f32[128,128], index: 1, kind: input, shape index: {}]
  %s2 = inlined_call_operand.vmem [shape: f32[1,128], index: 2, kind: input, shape index: {}]
  %s3 = inlined_call_operand.hbm [shape: f32[128,128], index: 3, kind: input, shape index: {}]
  %s4 = inlined_call_operand.vmem [shape: f32[1,128], index: 4, kind: input, shape index: {}]
  %s5 = inlined_call_operand.hbm [shape: f32[128,128], index: 5, kind: input, shape index: {}]
  %s6 = inlined_call_operand.vmem [shape: f32[1,128], index: 6, kind: input, shape index: {}]
  %s7 = inlined_call_operand.hbm [shape: f32[8,128], index: 7, kind: output, shape index: {}]
  %s8 = sld [smem:[#allocation0]]
  $region54: #{tpu_custom_call.1} parent=0
    _
  %s10 = ssub.s32 1, %s8
  %s11 = scalar_select 0, %s10, %s8
  $region1: #{tpu_custom_call.1} parent=0
    #allocation4 [shape = 'u8[4096]{0}', space=vmem, size = 0x1000, scoped, tag = 'input window, operand 0, single buffered']
    #allocation5 [shape = 's32[1]{0}', space=sflag, size = 0x4, scoped, tag = 'scoped memory for tpu_custom_call.1']
    #allocation6 [shape = 's32[1]{0}', space=sflag, size = 0x4, scoped, tag = 'scoped memory for tpu_custom_call.1']
    #allocation7 [shape = 'u8[65536]{0}', space=vmem, size = 0x10000, scoped, tag = 'input window, operand 1, single buffered']
    #allocation8 [shape = 's32[1]{0}', space=sflag, size = 0x4, scoped, tag = 'scoped memory for tpu_custom_call.1']
    #allocation9 [shape = 'u8[65536]{0}', space=vmem, size = 0x10000, scoped, tag = 'input window, operand 3, single buffered']
    #allocation10 [shape = 'u8[65536]{0}', space=vmem, size = 0x10000, scoped, tag = 'input window, operand 5, single buffered']
    #allocation11 [shape = 's32[1]{0}', space=sflag, size = 0x4, scoped, tag = 'scoped memory for tpu_custom_call.1']
    #allocation12 [shape = 'u8[4096]{0}', space=vmem, size = 0x1000, scoped, tag = 'output window, operand 0, single buffered']
    %12 = vsyncpa [#allocation5], 0
    %13 = vsyncpa [#allocation8], 0
    %14 = vsyncpa [#allocation11], 0
    %15 = vsyncpa [#allocation6], 0
    // Predicated region
    $region2: #{tpu_custom_call.1} parent=1 // pred_check
      _
    $region3: #{tpu_custom_call.1} parent=1 // pred_check_branch
      %17 = sbr.rel (0) target = $region5
    $region4: #{tpu_custom_call.1} parent=1 // pred_region
      %s19 = ssub.s32 128, 128
      %20 = vsyncadd [#allocation5], %s19
      %s22 = sshll.u32 [#allocation4], 4
      %s23 = int_to_ptr.vmem [resolvable:$true] %s22
      %25 = dma.hbm_to_vmem [thread:$0]  %s0, 128, %s23, [#allocation5]
    $region5: #{tpu_custom_call.1} parent=1 // pred_fallthru
      _
    // Predicated region
    $region6: #{tpu_custom_call.1} parent=1 // pred_check
      _
    $region7: #{tpu_custom_call.1} parent=1 // pred_check_branch
      %27 = sbr.rel (0) target = $region9
    $region8: #{tpu_custom_call.1} parent=1 // pred_region
      %s29 = ssub.s32 2048, 2048
      %30 = vsyncadd [#allocation8], %s29
      %s31 = sshll.u32 [#allocation7], 4
      %s32 = int_to_ptr.vmem [resolvable:$true] %s31
      %37 = dma.hbm_to_vmem [thread:$0]  %s1, 2048, %s32, [#allocation8], 128, 128, 8
    $region9: #{tpu_custom_call.1} parent=1 // pred_fallthru
      _
    // Predicated region
    $region10: #{tpu_custom_call.1} parent=1 // pred_check
      _
    $region11: #{tpu_custom_call.1} parent=1 // pred_check_branch
      %39 = sbr.rel (0) target = $region13
    $region12: #{tpu_custom_call.1} parent=1 // pred_region
      _
    $region13: #{tpu_custom_call.1} parent=1 // pred_fallthru
      _
    // Predicated region
    $region14: #{tpu_custom_call.1} parent=1 // pred_check
      _
    $region15: #{tpu_custom_call.1} parent=1 // pred_check_branch
      %41 = sbr.rel (0) target = $region17
    $region16: #{tpu_custom_call.1} parent=1 // pred_region
      %s43 = ssub.s32 2048, 2048
      %44 = vsyncadd [#allocation8], %s43
      %s45 = sshll.u32 [#allocation9], 4
      %s46 = int_to_ptr.vmem [resolvable:$true] %s45
      %51 = dma.hbm_to_vmem [thread:$0]  %s3, 2048, %s46, [#allocation8], 128, 128, 8
    $region17: #{tpu_custom_call.1} parent=1 // pred_fallthru
      _
    // Predicated region
    $region18: #{tpu_custom_call.1} parent=1 // pred_check
      _
    $region19: #{tpu_custom_call.1} parent=1 // pred_check_branch
      %53 = sbr.rel (0) target = $region21
    $region20: #{tpu_custom_call.1} parent=1 // pred_region
      _
    $region21: #{tpu_custom_call.1} parent=1 // pred_fallthru
      _
    // Predicated region
    $region22: #{tpu_custom_call.1} parent=1 // pred_check
      _
    $region23: #{tpu_custom_call.1} parent=1 // pred_check_branch
      %55 = sbr.rel (0) target = $region25
    $region24: #{tpu_custom_call.1} parent=1 // pred_region
      %s57 = ssub.s32 2048, 2048
      %58 = vsyncadd [#allocation11], %s57
      %s59 = sshll.u32 [#allocation10], 4
      %s60 = int_to_ptr.vmem [resolvable:$true] %s59
      %65 = dma.hbm_to_vmem [thread:$0]  %s5, 2048, %s60, [#allocation11], 128, 128, 8
    $region25: #{tpu_custom_call.1} parent=1 // pred_fallthru
      _
    // Predicated region
    $region26: #{tpu_custom_call.1} parent=1 // pred_check
      _
    $region27: #{tpu_custom_call.1} parent=1 // pred_check_branch
      %67 = sbr.rel (0) target = $region29
    $region28: #{tpu_custom_call.1} parent=1 // pred_region
      _
    $region29: #{tpu_custom_call.1} parent=1 // pred_fallthru
      _
    // Predicated region
    $region30: #{tpu_custom_call.1} parent=1 // pred_check
      _
    $region31: #{tpu_custom_call.1} parent=1 // pred_check_branch
      %69 = sbr.rel (0) target = $region33
    $region32: #{tpu_custom_call.1} parent=1 // pred_region
      %70 = dma.done [#allocation5], 128
    $region33: #{tpu_custom_call.1} parent=1 // pred_fallthru
      _
    // Predicated region
    $region34: #{tpu_custom_call.1} parent=1 // pred_check
      _
    $region35: #{tpu_custom_call.1} parent=1 // pred_check_branch
      %72 = sbr.rel (0) target = $region37
    $region36: #{tpu_custom_call.1} parent=1 // pred_region
      %73 = dma.done [#allocation8], 2048
    $region37: #{tpu_custom_call.1} parent=1 // pred_fallthru
      _
    // Predicated region
    $region38: #{tpu_custom_call.1} parent=1 // pred_check
      _
    $region39: #{tpu_custom_call.1} parent=1 // pred_check_branch
      %75 = sbr.rel (0) target = $region41
    $region40: #{tpu_custom_call.1} parent=1 // pred_region
      %76 = dma.done [#allocation8], 2048
    $region41: #{tpu_custom_call.1} parent=1 // pred_fallthru
      _
    // Predicated region
    $region42: #{tpu_custom_call.1} parent=1 // pred_check
      _
    $region43: #{tpu_custom_call.1} parent=1 // pred_check_branch
      %78 = sbr.rel (0) target = $region45
    $region44: #{tpu_custom_call.1} parent=1 // pred_region
      %79 = dma.done [#allocation11], 2048
    $region45: #{tpu_custom_call.1} parent=1 // pred_fallthru
      _
    %v81 = vld [vmem:[#allocation4] sm:$0xff]
    %v82 = vpack.c.bf16 %v81, %v81
    %v83 = vld [vmem:[#allocation7] sm:$0xff]
    %v84 = vld [vmem:[#allocation7 + $0x8] sm:$0xff]
    %v85 = vld [vmem:[#allocation7 + $0x10] sm:$0xff]
    %v86 = vld [vmem:[#allocation7 + $0x18] sm:$0xff]
    %v87 = vld [vmem:[#allocation7 + $0x20] sm:$0xff]
    %v88 = vld [vmem:[#allocation7 + $0x28] sm:$0xff]
    %v89 = vld [vmem:[#allocation7 + $0x30] sm:$0xff]
    %v90 = vld [vmem:[#allocation7 + $0x38] sm:$0xff]
    %v91 = vld [vmem:[#allocation7 + $0x40] sm:$0xff]
    %v92 = vld [vmem:[#allocation7 + $0x48] sm:$0xff]
    %v93 = vld [vmem:[#allocation7 + $0x50] sm:$0xff]
    %v94 = vld [vmem:[#allocation7 + $0x58] sm:$0xff]
    %v95 = vld [vmem:[#allocation7 + $0x60] sm:$0xff]
    %v96 = vld [vmem:[#allocation7 + $0x68] sm:$0xff]
    %v97 = vld [vmem:[#allocation7 + $0x70] sm:$0xff]
    %v98 = vld [vmem:[#allocation7 + $0x78] sm:$0xff]
    %v99 = vpack.c.bf16 %v84, %v83
    %v100 = vpack.c.bf16 %v86, %v85
    %v101 = vpack.c.bf16 %v88, %v87
    %v102 = vpack.c.bf16 %v90, %v89
    %v103 = vpack.c.bf16 %v92, %v91
    %v104 = vpack.c.bf16 %v94, %v93
    %v105 = vpack.c.bf16 %v96, %v95
    %v106 = vpack.c.bf16 %v98, %v97
    %v107 = vld [vmem:[%s2] sm:$0x1]
    %v109 = vlaneseq
    %v110 = vshrl.u32 %v109, 7
    %v111 = vsub.s32 0, %v110
    %v112 = vrot.slane %v107, %v111
    %114 = vmatprep.subr.bf16.mxu0 0
    %115 = vmatpush1.bf16.msra.mxu0 %v106
    %116 = vmatprep.subr.bf16.mxu0 0
    %117 = vmatpush1.bf16.msra.mxu0 %v105
    %118 = vmatprep.subr.bf16.mxu0 0
    %119 = vmatpush1.bf16.msra.mxu0 %v104
    %120 = vmatprep.subr.bf16.mxu0 0
    %121 = vmatpush1.bf16.msra.mxu0 %v103
    %122 = vmatprep.subr.bf16.mxu0 0
    %123 = vmatpush1.bf16.msra.mxu0 %v102
    %124 = vmatprep.subr.bf16.mxu0 0
    %125 = vmatpush1.bf16.msra.mxu0 %v101
    %126 = vmatprep.subr.bf16.mxu0 0
    %127 = vmatpush1.bf16.msra.mxu0 %v100
    %128 = vmatprep.subr.bf16.mxu0 0
    %129 = vmatpush1.bf16.msra.mxu0 %v99
    %130 = vmatprep.subr.bf16.mxu0 0
    %131 = vmatpush2.bf16.msra.mxu0 0
    %132 = vmatprep.subr.bf16.mxu0 0
    %133 = vmatpush2.bf16.msra.mxu0 0
    %134 = vmatprep.subr.bf16.mxu0 0
    %135 = vmatpush2.bf16.msra.mxu0 0
    %136 = vmatprep.subr.bf16.mxu0 0
    %137 = vmatpush2.bf16.msra.mxu0 0
    %138 = vmatprep.subr.bf16.mxu0 0
    %139 = vmatpush2.bf16.msra.mxu0 0
    %140 = vmatprep.subr.bf16.mxu0 0
    %141 = vmatpush2.bf16.msra.mxu0 0
    %142 = vmatprep.subr.bf16.mxu0 0
    %143 = vmatpush2.bf16.msra.mxu0 0
    %144 = vmatprep.subr.bf16.mxu0 0
    %145 = vmatpush2.bf16.msra.mxu0 0
    %146 = vmatprep.mubr.bf16.mxu0 0
    %147 = vmatmul.mubr.bf16.gmra.mxu0 %v82
    %v148 = vpop.f32.mrf.mxu0
    %v149 = vadd.f32 %v112, %v148
    %v150 = vpop.f32.mrf.mxu0
    %v151 = vpop.f32.mrf.mxu0
    %v152 = vpop.f32.mrf.mxu0
    %153 = vdwg.mxu0
    %v154 = vmax.f32 %v149, 0.0
    %155 = vst [vmem:[#allocation2] sm:$0xff] %v154
    %v156 = vld [vmem:[#allocation2] sm:$0xff]
    %v157 = vpack.c.bf16 %v156, %v156
    %v158 = vld [vmem:[#allocation9] sm:$0xff]
    %v159 = vld [vmem:[#allocation9 + $0x8] sm:$0xff]
    %v160 = vld [vmem:[#allocation9 + $0x10] sm:$0xff]
    %v161 = vld [vmem:[#allocation9 + $0x18] sm:$0xff]
    %v162 = vld [vmem:[#allocation9 + $0x20] sm:$0xff]
    %v163 = vld [vmem:[#allocation9 + $0x28] sm:$0xff]
    %v164 = vld [vmem:[#allocation9 + $0x30] sm:$0xff]
    %v165 = vld [vmem:[#allocation9 + $0x38] sm:$0xff]
    %v166 = vld [vmem:[#allocation9 + $0x40] sm:$0xff]
    %v167 = vld [vmem:[#allocation9 + $0x48] sm:$0xff]
    %v168 = vld [vmem:[#allocation9 + $0x50] sm:$0xff]
    %v169 = vld [vmem:[#allocation9 + $0x58] sm:$0xff]
    %v170 = vld [vmem:[#allocation9 + $0x60] sm:$0xff]
    %v171 = vld [vmem:[#allocation9 + $0x68] sm:$0xff]
    %v172 = vld [vmem:[#allocation9 + $0x70] sm:$0xff]
    %v173 = vld [vmem:[#allocation9 + $0x78] sm:$0xff]
    %v174 = vpack.c.bf16 %v159, %v158
    %v175 = vpack.c.bf16 %v161, %v160
    %v176 = vpack.c.bf16 %v163, %v162
    %v177 = vpack.c.bf16 %v165, %v164
    %v178 = vpack.c.bf16 %v167, %v166
    %v179 = vpack.c.bf16 %v169, %v168
    %v180 = vpack.c.bf16 %v171, %v170
    %v181 = vpack.c.bf16 %v173, %v172
    %v182 = vld [vmem:[%s4] sm:$0x1]
    %v184 = vlaneseq
    %v185 = vshrl.u32 %v184, 7
    %v186 = vsub.s32 0, %v185
    %v187 = vrot.slane %v182, %v186
    %189 = vmatprep.subr.bf16.mxu0 0
    %190 = vmatpush1.bf16.msra.mxu0 %v181
    %191 = vmatprep.subr.bf16.mxu0 0
    %192 = vmatpush1.bf16.msra.mxu0 %v180
    %193 = vmatprep.subr.bf16.mxu0 0
    %194 = vmatpush1.bf16.msra.mxu0 %v179
    %195 = vmatprep.subr.bf16.mxu0 0
    %196 = vmatpush1.bf16.msra.mxu0 %v178
    %197 = vmatprep.subr.bf16.mxu0 0
    %198 = vmatpush1.bf16.msra.mxu0 %v177
    %199 = vmatprep.subr.bf16.mxu0 0
    %200 = vmatpush1.bf16.msra.mxu0 %v176
    %201 = vmatprep.subr.bf16.mxu0 0
    %202 = vmatpush1.bf16.msra.mxu0 %v175
    %203 = vmatprep.subr.bf16.mxu0 0
    %204 = vmatpush1.bf16.msra.mxu0 %v174
    %205 = vmatprep.subr.bf16.mxu0 0
    %206 = vmatpush2.bf16.msra.mxu0 0
    %207 = vmatprep.subr.bf16.mxu0 0
    %208 = vmatpush2.bf16.msra.mxu0 0
    %209 = vmatprep.subr.bf16.mxu0 0
    %210 = vmatpush2.bf16.msra.mxu0 0
    %211 = vmatprep.subr.bf16.mxu0 0
    %212 = vmatpush2.bf16.msra.mxu0 0
    %213 = vmatprep.subr.bf16.mxu0 0
    %214 = vmatpush2.bf16.msra.mxu0 0
    %215 = vmatprep.subr.bf16.mxu0 0
    %216 = vmatpush2.bf16.msra.mxu0 0
    %217 = vmatprep.subr.bf16.mxu0 0
    %218 = vmatpush2.bf16.msra.mxu0 0
    %219 = vmatprep.subr.bf16.mxu0 0
    %220 = vmatpush2.bf16.msra.mxu0 0
    %221 = vmatprep.mubr.bf16.mxu0 0
    %222 = vmatmul.mubr.bf16.gmra.mxu0 %v157
    %v223 = vpop.f32.mrf.mxu0
    %v224 = vadd.f32 %v187, %v223
    %v225 = vpop.f32.mrf.mxu0
    %v226 = vpop.f32.mrf.mxu0
    %v227 = vpop.f32.mrf.mxu0
    %228 = vdwg.mxu0
    %v229 = vmax.f32 %v224, 0.0
    %230 = vst [vmem:[#allocation3] sm:$0xff] %v229
    %v231 = vld [vmem:[#allocation3] sm:$0xff]
    %v232 = vpack.c.bf16 %v231, %v231
    %v233 = vld [vmem:[#allocation10] sm:$0xff]
    %v234 = vld [vmem:[#allocation10 + $0x8] sm:$0xff]
    %v235 = vld [vmem:[#allocation10 + $0x10] sm:$0xff]
    %v236 = vld [vmem:[#allocation10 + $0x18] sm:$0xff]
    %v237 = vld [vmem:[#allocation10 + $0x20] sm:$0xff]
    %v238 = vld [vmem:[#allocation10 + $0x28] sm:$0xff]
    %v239 = vld [vmem:[#allocation10 + $0x30] sm:$0xff]
    %v240 = vld [vmem:[#allocation10 + $0x38] sm:$0xff]
    %v241 = vld [vmem:[#allocation10 + $0x40] sm:$0xff]
    %v242 = vld [vmem:[#allocation10 + $0x48] sm:$0xff]
    %v243 = vld [vmem:[#allocation10 + $0x50] sm:$0xff]
    %v244 = vld [vmem:[#allocation10 + $0x58] sm:$0xff]
    %v245 = vld [vmem:[#allocation10 + $0x60] sm:$0xff]
    %v246 = vld [vmem:[#allocation10 + $0x68] sm:$0xff]
    %v247 = vld [vmem:[#allocation10 + $0x70] sm:$0xff]
    %v248 = vld [vmem:[#allocation10 + $0x78] sm:$0xff]
    %v249 = vpack.c.bf16 %v234, %v233
    %v250 = vpack.c.bf16 %v236, %v235
    %v251 = vpack.c.bf16 %v238, %v237
    %v252 = vpack.c.bf16 %v240, %v239
    %v253 = vpack.c.bf16 %v242, %v241
    %v254 = vpack.c.bf16 %v244, %v243
    %v255 = vpack.c.bf16 %v246, %v245
    %v256 = vpack.c.bf16 %v248, %v247
    %v257 = vld [vmem:[%s6] sm:$0x1]
    %v259 = vlaneseq
    %v260 = vshrl.u32 %v259, 7
    %v261 = vsub.s32 0, %v260
    %v262 = vrot.slane %v257, %v261
    %264 = vmatprep.subr.bf16.mxu0 0
    %265 = vmatpush1.bf16.msra.mxu0 %v256
    %266 = vmatprep.subr.bf16.mxu0 0
    %267 = vmatpush1.bf16.msra.mxu0 %v255
    %268 = vmatprep.subr.bf16.mxu0 0
    %269 = vmatpush1.bf16.msra.mxu0 %v254
    %270 = vmatprep.subr.bf16.mxu0 0
    %271 = vmatpush1.bf16.msra.mxu0 %v253
    %272 = vmatprep.subr.bf16.mxu0 0
    %273 = vmatpush1.bf16.msra.mxu0 %v252
    %274 = vmatprep.subr.bf16.mxu0 0
    %275 = vmatpush1.bf16.msra.mxu0 %v251
    %276 = vmatprep.subr.bf16.mxu0 0
    %277 = vmatpush1.bf16.msra.mxu0 %v250
    %278 = vmatprep.subr.bf16.mxu0 0
    %279 = vmatpush1.bf16.msra.mxu0 %v249
    %280 = vmatprep.subr.bf16.mxu0 0
    %281 = vmatpush2.bf16.msra.mxu0 0
    %282 = vmatprep.subr.bf16.mxu0 0
    %283 = vmatpush2.bf16.msra.mxu0 0
    %284 = vmatprep.subr.bf16.mxu0 0
    %285 = vmatpush2.bf16.msra.mxu0 0
    %286 = vmatprep.subr.bf16.mxu0 0
    %287 = vmatpush2.bf16.msra.mxu0 0
    %288 = vmatprep.subr.bf16.mxu0 0
    %289 = vmatpush2.bf16.msra.mxu0 0
    %290 = vmatprep.subr.bf16.mxu0 0
    %291 = vmatpush2.bf16.msra.mxu0 0
    %292 = vmatprep.subr.bf16.mxu0 0
    %293 = vmatpush2.bf16.msra.mxu0 0
    %294 = vmatprep.subr.bf16.mxu0 0
    %295 = vmatpush2.bf16.msra.mxu0 0
    %296 = vmatprep.mubr.bf16.mxu0 0
    %297 = vmatmul.mubr.bf16.gmra.mxu0 %v232
    %v298 = vpop.f32.mrf.mxu0
    %v299 = vadd.f32 %v262, %v298
    %v300 = vpop.f32.mrf.mxu0
    %v301 = vpop.f32.mrf.mxu0
    %v302 = vpop.f32.mrf.mxu0
    %303 = vdwg.mxu0
    %304 = vst [vmem:[#allocation12] sm:$0xff] %v299
    // Predicated region
    $region46: #{tpu_custom_call.1} parent=1 // pred_check
      _
    $region47: #{tpu_custom_call.1} parent=1 // pred_check_branch
      %306 = sbr.rel (0) target = $region49
    $region48: #{tpu_custom_call.1} parent=1 // pred_region
      %s308 = ssub.s32 128, 128
      %309 = vsyncadd [#allocation6], %s308
      %s311 = sshll.u32 [#allocation12], 4
      %s312 = int_to_ptr.vmem [resolvable:$true] %s311
      %314 = dma.vmem_to_hbm [thread:$0]  %s312, 128, %s7, [#allocation6]
    $region49: #{tpu_custom_call.1} parent=1 // pred_fallthru
      _
    // Predicated region
    $region50: #{tpu_custom_call.1} parent=1 // pred_check
      _
    $region51: #{tpu_custom_call.1} parent=1 // pred_check_branch
      %316 = sbr.rel (0) target = $region53
    $region52: #{tpu_custom_call.1} parent=1 // pred_region
      %317 = dma.done [#allocation6], 128
    $region53: #{tpu_custom_call.1} parent=1 // pred_fallthru
      _
    %318 = vsyncpa [#allocation5], 1
    %319 = vsyncpa [#allocation8], 1
    %320 = vsyncpa [#allocation11], 1
    %321 = vsyncpa [#allocation6], 1

</llo_original>
